<compile_context>
chip_gen: v6e
topology: v6e:2x2x1
jax: 0.10.0
libtpu: 0.0.40
codegen_flags: <defaults>
</compile_context>

<pallas_src>
import jax
import jax.numpy as jnp
import numpy as np
from jax import lax
from jax.experimental import pallas as pl
from jax.experimental.pallas import tpu as pltpu


# ----------------------------- Pallas kernel -------------------------------

def transr_kernel(lo_ref, hi_ref, off_ref,       # SMEM scalar prefetch
                  h_ref, t_ref, r_ref,           # VMEM (tile_b, D) f32 (sorted)
                  matT_ref,                      # VMEM (rel_n, D, D) f32, M^T table
                  o_ref,                         # VMEM (1, tile_b) f32 lane-dense
                  hmt_ref, acc_ref):             # VMEM (tile_b, D) f32 scratch
    i = pl.program_id(0)
    tile_b = h_ref.shape[0]
    base = i * tile_b

    # Fused difference: d = M (h - t) + r  -> only one projection per example.
    hmt_ref[...] = h_ref[...] - t_ref[...]
    acc_ref[...] = jnp.zeros_like(acc_ref)

    lo = lo_ref[i]          # first relation id present in this (sorted) tile
    hi = hi_ref[i]          # last relation id present in this tile

    def body(g, carry):
        # One whole-tile MXU matmul for relation g: (tile_b, D) @ (D, D).
        proj = jnp.dot(hmt_ref[...], matT_ref[g],
                       preferred_element_type=jnp.float32)
        # Rows of relation g occupy sorted global rows [off[g], off[g+1]).
        row = lax.broadcasted_iota(jnp.int32, (tile_b, 1), 0) + base
        mask = (row >= off_ref[g]) & (row < off_ref[g + 1])
        acc_ref[...] = jnp.where(mask, proj, acc_ref[...])
        return carry

    lax.fori_loop(lo, hi + 1, body, 0)

    d = acc_ref[...] + r_ref[...]                                # (tile_b, D)
    # L2 norm per row, written lane-dense as a (1, tile_b) row.
    o_ref[...] = jnp.sqrt(jnp.sum(d * d, axis=-1))[None, :]


def transr_forward_pallas(h, t, r, rel_ids, mat_table, *, tile_b=256,
                          vmem_limit_bytes=32 * 1024 * 1024):
    """h, t, r: (B, D) f32; rel_ids: (B,) int; mat_table: (rel_n, D, D) -> (B,) f32."""
    B, D = h.shape
    rel_n = mat_table.shape[0]
    assert mat_table.shape == (rel_n, D, D)
    assert tile_b % 128 == 0, "tile_b must be a multiple of 128 (lane-dense output)"

    h = h.astype(jnp.float32)
    t = t.astype(jnp.float32)
    r = r.astype(jnp.float32)
    rel_ids = rel_ids.astype(jnp.int32)

    # ---- group-by-relation preprocessing (plain JAX, cheap) ----------------
    order = jnp.argsort(rel_ids)                  # (B,)
    rel_s = rel_ids[order]
    h_s, t_s, r_s = h[order], t[order], r[order]

    n_tiles = (B + tile_b - 1) // tile_b
    B_pad = n_tiles * tile_b
    pad = B_pad - B
    if pad:
        h_s = jnp.pad(h_s, ((0, pad), (0, 0)))
        t_s = jnp.pad(t_s, ((0, pad), (0, 0)))
        r_s = jnp.pad(r_s, ((0, pad), (0, 0)))
        rel_s = jnp.pad(rel_s, (0, pad), mode="edge")   # keep tile rel-ranges tight

    # Group offsets: rows of relation g live at sorted positions [off[g], off[g+1]).
    off = jnp.searchsorted(rel_s, jnp.arange(rel_n + 1, dtype=jnp.int32))
    off = off.astype(jnp.int32)
    rel_blk = rel_s.reshape(n_tiles, tile_b)
    lo = rel_blk[:, 0].astype(jnp.int32)          # (n_tiles,)
    hi = rel_blk[:, -1].astype(jnp.int32)         # (n_tiles,)

    # Pre-transpose so the kernel computes  hmt @ M^T  == (M @ hmt^T)^T rows.
    matT = jnp.swapaxes(mat_table.astype(jnp.float32), 1, 2)   # (rel_n, D, D)

    out = pl.pallas_call(
        transr_kernel,
        out_shape=jax.ShapeDtypeStruct((1, B_pad), jnp.float32),
        grid_spec=pltpu.PrefetchScalarGridSpec(
            num_scalar_prefetch=3,                # lo, hi, off -> SMEM
            grid=(n_tiles,),
            in_specs=[
                pl.BlockSpec((tile_b, D), lambda i, lo, hi, off: (i, 0)),
                pl.BlockSpec((tile_b, D), lambda i, lo, hi, off: (i, 0)),
                pl.BlockSpec((tile_b, D), lambda i, lo, hi, off: (i, 0)),
                # Full relation-matrix table, VMEM-resident (constant block
                # index => DMA'd once, not re-copied per grid step).
                pl.BlockSpec((rel_n, D, D), lambda i, lo, hi, off: (0, 0, 0)),
            ],
            out_specs=pl.BlockSpec((1, tile_b), lambda i, lo, hi, off: (0, i)),
            scratch_shapes=[pltpu.VMEM((tile_b, D), jnp.float32),   # hmt
                            pltpu.VMEM((tile_b, D), jnp.float32)],  # acc
        ),
        compiler_params=pltpu.CompilerParams(
            dimension_semantics=("parallel",),
            vmem_limit_bytes=vmem_limit_bytes,
        ),
    )(lo, hi, off, h_s, t_s, r_s, matT)

    out_sorted = out[0, :B]                        # sorted order, pads dropped
    # Un-sort back to the original example order.
    return jnp.zeros((B,), out_sorted.dtype).at[order].set(out_sorted)


# ------------------------- Parameter construction --------------------------

def init_traditional(key, emb_n, dim):
    """uniform(-6/sqrt(dim), 6/sqrt(dim)) then L2-normalize rows (dim=1)."""
    rng = 6.0 / (dim ** 0.5)
    w = jax.random.uniform(key, (emb_n, dim), jnp.float32, -rng, rng)
    norm = jnp.linalg.norm(w, axis=1, keepdims=True)
    return w / jnp.maximum(norm, 1e-12)


def build_params(key, ent_n, rel_n, dim):
    k1, k2 = jax.random.split(key)
    ent_emb = init_traditional(k1, ent_n, dim)
    rel_emb = init_traditional(k2, rel_n, dim)
    # mat_emb: identity matrix repeated per relation -> (rel_n, dim, dim)
    # (same values as the module's Embedding(rel_n*dim, dim) viewed per-relation).
    mat_emb = jnp.tile(jnp.eye(dim, dtype=jnp.float32)[None], (rel_n, 1, 1))
    return ent_emb, rel_emb, mat_emb


def model_forward(params, h_ids, r_typ, t_ids, *, tile_b=256):
    ent_emb, rel_emb, mat_emb = params
    # Cheap embedding row gathers stay in plain JAX; the projection happens
    # inside the kernel against the VMEM-resident relation-matrix table.
    h = ent_emb[h_ids]            # (B, D)
    t = ent_emb[t_ids]            # (B, D)
    r = rel_emb[r_typ]            # (B, D)
    return transr_forward_pallas(h, t, r, r_typ, mat_emb, tile_b=tile_b)


# --------------------------------- main -------------------------------------

if __name__ == "__main__":
    # Small synthetic config (reference uses ent_n=14541, rel_n=237, dim=50).
    ent_n, rel_n, dim = 128, 16, 32
    B = 200                      # deliberately ragged (not a multiple of tile_b)
    tile_b = 128

    key = jax.random.PRNGKey(0)
    kp, kh, kr, kt, km = jax.random.split(key, 5)

    params = build_params(kp, ent_n, rel_n, dim)

    h_ids = jax.random.randint(kh, (B,), 0, ent_n, dtype=jnp.int32)
    r_typ = jax.random.randint(kr, (B,), 0, rel_n, dtype=jnp.int32)
    t_ids = jax.random.randint(kt, (B,), 0, ent_n, dtype=jnp.int32)

    out = model_forward(params, h_ids, r_typ, t_ids, tile_b=tile_b)
    out = jax.block_until_ready(out)

    # Reference check 1: module-faithful params (identity projection matrices).
    ent_emb, rel_emb, mat_emb = params
    h = ent_emb[h_ids]; t = ent_emb[t_ids]; r = rel_emb[r_typ]
    M = mat_emb[r_typ]
    h_p = jnp.einsum('bij,bj->bi', M, h)
    t_p = jnp.einsum('bij,bj->bi', M, t)
    ref = jnp.linalg.norm(h_p + r - t_p, axis=-1)
    np.testing.assert_allclose(np.asarray(out), np.asarray(ref),
                               rtol=1e-4, atol=1e-5)

    # Reference check 2: random (non-identity) projection matrices -- exercises
    # the grouped-matmul path on a non-degenerate case (including relation
    # segments that straddle the tile boundary).
    mat_rand = 0.3 * jax.random.normal(km, (rel_n, dim, dim), jnp.float32)
    out2 = transr_forward_pallas(h, t, r, r_typ, mat_rand, tile_b=tile_b)
    out2 = jax.block_until_ready(out2)
    M2 = mat_rand[r_typ]
    h_p2 = jnp.einsum('bij,bj->bi', M2, h)
    t_p2 = jnp.einsum('bij,bj->bi', M2, t)
    ref2 = jnp.linalg.norm(h_p2 + r - t_p2, axis=-1)
    np.testing.assert_allclose(np.asarray(out2), np.asarray(ref2),
                               rtol=1e-4, atol=1e-5)

    print("KERNEL_OK")
</pallas_src>

<mosaic_0001>
module attributes {stable_mosaic.version = 11 : i64} {
  func.func @transr_kernel(%arg0: i32, %arg1: memref<2xi32, #tpu.memory_space<smem>>, %arg2: memref<2xi32, #tpu.memory_space<smem>>, %arg3: memref<17xi32, #tpu.memory_space<smem>>, %arg4: memref<128x32xf32, #tpu.memory_space<vmem>>, %arg5: memref<128x32xf32, #tpu.memory_space<vmem>>, %arg6: memref<128x32xf32, #tpu.memory_space<vmem>>, %arg7: memref<16x32x32xf32, #tpu.memory_space<vmem>>, %arg8: memref<1x128xf32, #tpu.memory_space<vmem>>, %arg9: memref<128x32xf32, #tpu.memory_space<vmem>>, %arg10: memref<128x32xf32, #tpu.memory_space<vmem>>) attributes {dimension_semantics = [#tpu.dimension_semantics<parallel>], iteration_bounds = array<i64: 2>, scalar_prefetch = 3 : i64, scratch_operands = 2 : i64, tpu.core_type = #tpu.core_type<tc>, window_params = [{transform_indices = @transform_0, window_bounds = array<i64: 128, 32>}, {transform_indices = @transform_1, window_bounds = array<i64: 128, 32>}, {transform_indices = @transform_2, window_bounds = array<i64: 128, 32>}, {pipeline_mode = #tpu.pipeline_mode<synchronous>, transform_indices = @transform_3, window_bounds = array<i64: 16, 32, 32>}, {transform_indices = @transform_4, window_bounds = array<i64: 1, 128>}]} {
    %c128_i32 = arith.constant 128 : i32
    %0 = arith.muli %arg0, %c128_i32 : i32
    %c0 = arith.constant 0 : index
    %c0_0 = arith.constant 0 : index
    %1 = vector.load %arg4[%c0, %c0_0] : memref<128x32xf32, #tpu.memory_space<vmem>>, vector<128x32xf32>
    %c0_1 = arith.constant 0 : index
    %c0_2 = arith.constant 0 : index
    %2 = vector.load %arg5[%c0_1, %c0_2] : memref<128x32xf32, #tpu.memory_space<vmem>>, vector<128x32xf32>
    %3 = arith.subf %1, %2 : vector<128x32xf32>
    %c0_3 = arith.constant 0 : index
    %c0_4 = arith.constant 0 : index
    %4 = vector.load %arg9[%c0_3, %c0_4] : memref<128x32xf32, #tpu.memory_space<vmem>>, vector<128x32xf32>
    tpu.vector_store %arg9[%c0_3, %c0_4], %3 {strides = array<i32>} : memref<128x32xf32, #tpu.memory_space<vmem>>, vector<128x32xf32>,
    %cst = arith.constant 0.000000e+00 : f32
    %5 = vector.broadcast %cst : f32 to vector<128x32xf32>
    %c0_5 = arith.constant 0 : index
    %c0_6 = arith.constant 0 : index
    %6 = vector.load %arg10[%c0_5, %c0_6] : memref<128x32xf32, #tpu.memory_space<vmem>>, vector<128x32xf32>
    tpu.vector_store %arg10[%c0_5, %c0_6], %5 {strides = array<i32>} : memref<128x32xf32, #tpu.memory_space<vmem>>, vector<128x32xf32>,
    %7 = arith.index_cast %arg0 : i32 to index
    %8 = memref.load %arg1[%7] : memref<2xi32, #tpu.memory_space<smem>>
    %9 = arith.index_cast %arg0 : i32 to index
    %10 = memref.load %arg2[%9] : memref<2xi32, #tpu.memory_space<smem>>
    %c1_i32 = arith.constant 1 : i32
    %11 = arith.addi %10, %c1_i32 : i32
    %c0_i32 = arith.constant 0 : i32
    %12 = arith.subi %11, %8 : i32
    %13 = arith.addi %8, %12 : i32
    %c1_i32_7 = arith.constant 1 : i32
    scf.for %arg11 = %8 to %13 step %c1_i32_7  : i32 {
      %c0_15 = arith.constant 0 : index
      %c0_16 = arith.constant 0 : index
      %22 = vector.load %arg9[%c0_15, %c0_16] : memref<128x32xf32, #tpu.memory_space<vmem>>, vector<128x32xf32>
      %23 = arith.index_cast %arg11 : i32 to index
      %c0_17 = arith.constant 0 : index
      %c0_18 = arith.constant 0 : index
      %24 = vector.load %arg7[%23, %c0_17, %c0_18] : memref<16x32x32xf32, #tpu.memory_space<vmem>>, vector<1x32x32xf32>
      %25 = vector.shape_cast %24 : vector<1x32x32xf32> to vector<32x32xf32>
      %cst_19 = arith.constant dense<0.000000e+00> : vector<128x32xf32>
      %26 = tpu.matmul %22, %25, %cst_19 {dimension_numbers = #tpu.dot_dimension_numbers<[1], [0], [0], [1], [0, 0, 1, 1], [], []>} : vector<128x32xf32>, vector<32x32xf32>, vector<128x32xf32> -> vector<128x32xf32>
      %27 = tpu.iota {dimensions = array<i32: 0>} : vector<128x1xi32>
      %28 = vector.broadcast %0 : i32 to vector<128x1xi32>
      %29 = arith.addi %27, %28 : vector<128x1xi32>
      %30 = arith.index_cast %arg11 : i32 to index
      %31 = memref.load %arg3[%30] : memref<17xi32, #tpu.memory_space<smem>>
      %32 = vector.broadcast %31 : i32 to vector<128x1xi32>
      %33 = arith.cmpi sge, %29, %32 : vector<128x1xi32>
      %c1_i32_20 = arith.constant 1 : i32
      %34 = arith.addi %arg11, %c1_i32_20 : i32
      %35 = arith.index_cast %34 : i32 to index
      %36 = memref.load %arg3[%35] : memref<17xi32, #tpu.memory_space<smem>>
      %37 = vector.broadcast %36 : i32 to vector<128x1xi32>
      %38 = arith.cmpi slt, %29, %37 : vector<128x1xi32>
      %39 = arith.andi %33, %38 : vector<128x1xi1>
      %c0_21 = arith.constant 0 : index
      %c0_22 = arith.constant 0 : index
      %40 = vector.load %arg10[%c0_21, %c0_22] : memref<128x32xf32, #tpu.memory_space<vmem>>, vector<128x32xf32>
      %41 = vector.shape_cast %39 : vector<128x1xi1> to vector<128x1xi1>
      %42 = vector.broadcast %41 : vector<128x1xi1> to vector<128x32xi1>
      %43 = arith.select %42, %26, %40 : vector<128x32xi1>, vector<128x32xf32>
      %c0_23 = arith.constant 0 : index
      %c0_24 = arith.constant 0 : index
      %44 = vector.load %arg10[%c0_23, %c0_24] : memref<128x32xf32, #tpu.memory_space<vmem>>, vector<128x32xf32>
      tpu.vector_store %arg10[%c0_23, %c0_24], %43 {strides = array<i32>} : memref<128x32xf32, #tpu.memory_space<vmem>>, vector<128x32xf32>,
    }
    %c0_8 = arith.constant 0 : index
    %c0_9 = arith.constant 0 : index
    %14 = vector.load %arg10[%c0_8, %c0_9] : memref<128x32xf32, #tpu.memory_space<vmem>>, vector<128x32xf32>
    %c0_10 = arith.constant 0 : index
    %c0_11 = arith.constant 0 : index
    %15 = vector.load %arg6[%c0_10, %c0_11] : memref<128x32xf32, #tpu.memory_space<vmem>>, vector<128x32xf32>
    %16 = arith.addf %14, %15 : vector<128x32xf32>
    %17 = arith.mulf %16, %16 : vector<128x32xf32>
    %cst_12 = arith.constant dense<0.000000e+00> : vector<128xf32>
    %18 = vector.multi_reduction <add>, %17, %cst_12 [1] : vector<128x32xf32> to vector<128xf32>
    %19 = math.sqrt %18 : vector<128xf32>
    %20 = vector.shape_cast %19 : vector<128xf32> to vector<1x128xf32>
    %c0_13 = arith.constant 0 : index
    %c0_14 = arith.constant 0 : index
    %21 = vector.load %arg8[%c0_13, %c0_14] : memref<1x128xf32, #tpu.memory_space<vmem>>, vector<1x128xf32>
    tpu.vector_store %arg8[%c0_13, %c0_14], %20 {strides = array<i32>} : memref<1x128xf32, #tpu.memory_space<vmem>>, vector<1x128xf32>,
    return
  }
  func.func @transform_0(%arg0: i32, %arg1: memref<2xi32, #tpu.memory_space<smem>>, %arg2: memref<2xi32, #tpu.memory_space<smem>>, %arg3: memref<17xi32, #tpu.memory_space<smem>>) -> (i32, i32) {
    %c0_i32 = arith.constant 0 : i32
    %c0_i32_0 = arith.constant 0 : i32
    return %arg0, %c0_i32 : i32, i32
  }
  func.func @transform_1(%arg0: i32, %arg1: memref<2xi32, #tpu.memory_space<smem>>, %arg2: memref<2xi32, #tpu.memory_space<smem>>, %arg3: memref<17xi32, #tpu.memory_space<smem>>) -> (i32, i32) {
    %c0_i32 = arith.constant 0 : i32
    %c0_i32_0 = arith.constant 0 : i32
    return %arg0, %c0_i32 : i32, i32
  }
  func.func @transform_2(%arg0: i32, %arg1: memref<2xi32, #tpu.memory_space<smem>>, %arg2: memref<2xi32, #tpu.memory_space<smem>>, %arg3: memref<17xi32, #tpu.memory_space<smem>>) -> (i32, i32) {
    %c0_i32 = arith.constant 0 : i32
    %c0_i32_0 = arith.constant 0 : i32
    return %arg0, %c0_i32 : i32, i32
  }
  func.func @transform_3(%arg0: i32, %arg1: memref<2xi32, #tpu.memory_space<smem>>, %arg2: memref<2xi32, #tpu.memory_space<smem>>, %arg3: memref<17xi32, #tpu.memory_space<smem>>) -> (i32, i32, i32) {
    %c0_i32 = arith.constant 0 : i32
    %c0_i32_0 = arith.constant 0 : i32
    %c0_i32_1 = arith.constant 0 : i32
    %c0_i32_2 = arith.constant 0 : i32
    return %c0_i32, %c0_i32_0, %c0_i32_1 : i32, i32, i32
  }
  func.func @transform_4(%arg0: i32, %arg1: memref<2xi32, #tpu.memory_space<smem>>, %arg2: memref<2xi32, #tpu.memory_space<smem>>, %arg3: memref<17xi32, #tpu.memory_space<smem>>) -> (i32, i32) {
    %c0_i32 = arith.constant 0 : i32
    %c0_i32_0 = arith.constant 0 : i32
    return %c0_i32, %arg0 : i32, i32
  }
}

</mosaic_0001>

<llo_original>
// kernel: tpu_custom_call.1
$region0: #{tpu_custom_call.1}
  #allocation0 [shape = 'u32[]', space=smem, size = 0x4, offset = 0x4, fixed_abs, tag = 'smem constant byte address 0x4 - core index']
  #allocation1 [shape = 'u32[144,128]{1,0:T(1,128)}', space=vmem, size = 0x12000, scoped, tag = 'internal scratch']
  #allocation2 [shape = 'f32[128,32]{1,0:T(8,128)}', space=vmem, size = 0x10000, scoped, tag = 'scratch operand']
  #allocation3 [shape = 'f32[128,32]{1,0:T(8,128)}', space=vmem, size = 0x10000, scoped, tag = 'scratch operand']
  #allocation4 [shape = 's32[1]{0}', space=sflag, size = 0x4, scoped, tag = 'scoped memory for tpu_custom_call.1']
  #allocation5 [shape = 'u8[512]{0}', space=smem, size = 0x200, scoped, tag = 'prefetched SMEM operand 0']
  #allocation6 [shape = 'u8[512]{0}', space=smem, size = 0x200, scoped, tag = 'prefetched SMEM operand 1']
  #allocation7 [shape = 'u8[512]{0}', space=smem, size = 0x200, scoped, tag = 'prefetched SMEM operand 2']
  %s0 = inlined_call_operand.vmem [shape: s32[2], index: 0, kind: input, shape index: {}]
  %s1 = inlined_call_operand.vmem [shape: s32[2], index: 1, kind: input, shape index: {}]
  %s2 = inlined_call_operand.vmem [shape: s32[17], index: 2, kind: input, shape index: {}]
  %s3 = inlined_call_operand.vmem [shape: f32[256,32], index: 3, kind: input, shape index: {}]
  %s4 = inlined_call_operand.vmem [shape: f32[256,32], index: 4, kind: input, shape index: {}]
  %s5 = inlined_call_operand.vmem [shape: f32[256,32], index: 5, kind: input, shape index: {}]
  %s6 = inlined_call_operand.vmem [shape: f32[16,32,32], index: 6, kind: input, shape index: {}]
  %s7 = inlined_call_operand.hbm [shape: f32[1,256], index: 7, kind: output, shape index: {}]
  %s8 = sld [smem:[#allocation0]]
  $region56: #{tpu_custom_call.1} parent=0
    _
  %s10 = ssub.s32 1, %s8
  %s11 = scalar_select 0, %s10, %s8
  %s12 = sshll.u32 %s0, 4
  %s13 = int_to_ptr.vmem [resolvable:$true] %s12
  %15 = dma.vmem_to_smem %s13, 16, [#allocation5], [#allocation4]
  %s16 = sshll.u32 %s1, 4
  %s17 = int_to_ptr.vmem [resolvable:$true] %s16
  %19 = dma.vmem_to_smem %s17, 16, [#allocation6], [#allocation4]
  %s20 = sshll.u32 %s2, 4
  %s21 = int_to_ptr.vmem [resolvable:$true] %s20
  %23 = dma.vmem_to_smem %s21, 16, [#allocation7], [#allocation4]
  %24 = dma.done [#allocation4], 48
  %25 = sfence
  $region1: #{tpu_custom_call.1} parent=0
    #allocation8 [shape = 'u8[1024]{0}', space=vmem, size = 0x400, scoped, tag = 'output window, operand 0']
    #allocation9 [shape = 's32[2]{0}', space=sflag, size = 0x8, scoped, tag = 'scoped memory for tpu_custom_call.1']
    %26 = vsyncpa [#allocation9], 0
    %s27 = scalar_lea.sflag [#allocation9], 1
    %28 = vsyncpa %s27, 0
    loop: start=0, step=1, limit=4
    $region2: #{tpu_custom_call.1} parent=1 // loop_pre_header
      _
    $region3: #{tpu_custom_call.1} parent=1 // loop_header
      %s30 = sphi 0, %s34
      %p31 = scmp.ge.s32.totalorder %s30, 4
      %s40 = sphi 0, %s42
      %s43 = sphi 0, %s40
      %s44 = sphi 0, %s43
      %s60 = sphi 0, %s44
      %s66 = sphi 0, %s68
      %s69 = sphi 0, %s66
      %s70 = sphi 0, %s69
      %s86 = sphi 0, %s70
      %s92 = sphi 0, %s94
      %s95 = sphi 0, %s92
      %s96 = sphi 0, %s95
      %s112 = sphi 0, %s96
      %s116 = sphi 0, %s116
      %s118 = sphi 0, %s116
      %s119 = sphi 0, %s118
      %s133 = sphi 0, %s119
      %s139 = sphi 0, %s141
      %s142 = sphi 0, %s139
      %s143 = sphi 0, %s142
      %s159 = sphi 0, %s143
    $region4: #{tpu_custom_call.1} parent=1 // loop_header_branch
      %33 = sbr.rel (%p31) target = $region8
    $region5: #{tpu_custom_call.1} parent=1 // loop_body
      %s35 = ssub.s32 %s30, 1
      %s36 = ssub.s32 %s30, 2
      %s37 = sadd.s32 %s30, 1
      %s38 = ssub.s32 %s30, %s37
      %p39 = scmp.eq.s32.totalorder %s38, 0
      %s41 = sadd.s32 %s40, 1
      %s42 = scalar_select %p39, %s40, %s41
      %p45 = pneg %p39
      %p46 = scmp.eq.s32.totalorder %s30, 1
      %p47 = por %p45, %p46
      %p48 = scmp.ne.s32.totalorder %s40, %s43
      %p49 = scmp.eq.s32.totalorder %s30, 0
      %p50 = por %p48, %p49
      %p51 = scmp.ne.s32.totalorder %s40, %s43
      %p52 = scmp.eq.s32.totalorder %s35, 1
      %p53 = por %p51, %p52
      %p54 = scmp.ne.s32.totalorder %s43, %s44
      %p55 = scmp.eq.s32.totalorder %s35, 0
      %p56 = por %p54, %p55
      %p57 = scmp.ne.s32.totalorder %s43, %s44
      %p58 = scmp.eq.s32.totalorder %s36, 1
      %p59 = por %p57, %p58
      %p61 = scmp.ne.s32.totalorder %s44, %s60
      %p62 = scmp.eq.s32.totalorder %s36, 0
      %p63 = por %p61, %p62
      %s64 = ssub.s32 %s30, %s37
      %p65 = scmp.eq.s32.totalorder %s64, 0
      %s67 = sadd.s32 %s66, 1
      %s68 = scalar_select %p65, %s66, %s67
      %p71 = pneg %p65
      %p72 = scmp.eq.s32.totalorder %s30, 1
      %p73 = por %p71, %p72
      %p74 = scmp.ne.s32.totalorder %s66, %s69
      %p75 = scmp.eq.s32.totalorder %s30, 0
      %p76 = por %p74, %p75
      %p77 = scmp.ne.s32.totalorder %s66, %s69
      %p78 = scmp.eq.s32.totalorder %s35, 1
      %p79 = por %p77, %p78
      %p80 = scmp.ne.s32.totalorder %s69, %s70
      %p81 = scmp.eq.s32.totalorder %s35, 0
      %p82 = por %p80, %p81
      %p83 = scmp.ne.s32.totalorder %s69, %s70
      %p84 = scmp.eq.s32.totalorder %s36, 1
      %p85 = por %p83, %p84
      %p87 = scmp.ne.s32.totalorder %s70, %s86
      %p88 = scmp.eq.s32.totalorder %s36, 0
      %p89 = por %p87, %p88
      %s90 = ssub.s32 %s30, %s37
      %p91 = scmp.eq.s32.totalorder %s90, 0
      %s93 = sadd.s32 %s92, 1
      %s94 = scalar_select %p91, %s92, %s93
      %p97 = pneg %p91
      %p98 = scmp.eq.s32.totalorder %s30, 1
      %p99 = por %p97, %p98
      %p100 = scmp.ne.s32.totalorder %s92, %s95
      %p101 = scmp.eq.s32.totalorder %s30, 0
      %p102 = por %p100, %p101
      %p103 = scmp.ne.s32.totalorder %s92, %s95
      %p104 = scmp.eq.s32.totalorder %s35, 1
      %p105 = por %p103, %p104
      %p106 = scmp.ne.s32.totalorder %s95, %s96
      %p107 = scmp.eq.s32.totalorder %s35, 0
      %p108 = por %p106, %p107
      %p109 = scmp.ne.s32.totalorder %s95, %s96
      %p110 = scmp.eq.s32.totalorder %s36, 1
      %p111 = por %p109, %p110
      %p113 = scmp.ne.s32.totalorder %s96, %s112
      %p114 = scmp.eq.s32.totalorder %s36, 0
      %p115 = por %p113, %p114
      %s117 = sadd.s32 %s116, 1
      %p120 = scmp.eq.s32.totalorder %s30, 1
      %p121 = scmp.ne.s32.totalorder %s116, %s118
      %p122 = scmp.eq.s32.totalorder %s30, 0
      %p123 = por %p121, %p122
      %p124 = scmp.ne.s32.totalorder %s116, %s118
      %p125 = scmp.eq.s32.totalorder %s35, 1
      %p126 = por %p124, %p125
      %p127 = scmp.ne.s32.totalorder %s118, %s119
      %p128 = scmp.eq.s32.totalorder %s35, 0
      %p129 = por %p127, %p128
      %p130 = scmp.ne.s32.totalorder %s118, %s119
      %p131 = scmp.eq.s32.totalorder %s36, 1
      %p132 = por %p130, %p131
      %p134 = scmp.ne.s32.totalorder %s119, %s133
      %p135 = scmp.eq.s32.totalorder %s36, 0
      %p136 = por %p134, %p135
      %s137 = ssub.s32 %s30, %s37
      %p138 = scmp.eq.s32.totalorder %s137, 0
      %s140 = sadd.s32 %s139, 1
      %s141 = scalar_select %p138, %s139, %s140
      %p144 = pneg %p138
      %p145 = scmp.eq.s32.totalorder %s30, 1
      %p146 = por %p144, %p145
      %p147 = scmp.ne.s32.totalorder %s139, %s142
      %p148 = scmp.eq.s32.totalorder %s30, 0
      %p149 = por %p147, %p148
      %p150 = scmp.ne.s32.totalorder %s139, %s142
      %p151 = scmp.eq.s32.totalorder %s35, 1
      %p152 = por %p150, %p151
      %p153 = scmp.ne.s32.totalorder %s142, %s143
      %p154 = scmp.eq.s32.totalorder %s35, 0
      %p155 = por %p153, %p154
      %p156 = scmp.ne.s32.totalorder %s142, %s143
      %p157 = scmp.eq.s32.totalorder %s36, 1
      %p158 = por %p156, %p157
      %p160 = scmp.ne.s32.totalorder %s143, %s159
      %p161 = scmp.eq.s32.totalorder %s36, 0
      %p162 = por %p160, %p161
      %p163 = scmp.le.s32.totalorder 1, %s30
      %p164 = scmp.lt.s32.totalorder %s30, 3
      %p165 = pnand %p163, %p164
      %p166 = pneg %p165
      // Predicated region
      $region9: #{tpu_custom_call.1} parent=5 // pred_check
        _
      $region10: #{tpu_custom_call.1} parent=5 // pred_check_branch
        %168 = sbr.rel (%p165) target = $region12
      $region11: #{tpu_custom_call.1} parent=5 // pred_region
        %s169 = ssub.s32 %s30, 1
        // Predicated region
        $region13: #{tpu_custom_call.1} parent=11 // pred_check
          %p170 = pneg %p129
        $region14: #{tpu_custom_call.1} parent=11 // pred_check_branch
          %172 = sbr.rel (%p170) target = $region16
        $region15: #{tpu_custom_call.1} parent=11 // pred_region
          _
        $region16: #{tpu_custom_call.1} parent=11 // pred_fallthru
          _
      $region12: #{tpu_custom_call.1} parent=5 // pred_fallthru
        _
      %p173 = scmp.lt.s32.totalorder %s30, 2
      // Predicated region
      $region17: #{tpu_custom_call.1} parent=5 // pred_check
        %p174 = pneg %p173
      $region18: #{tpu_custom_call.1} parent=5 // pred_check_branch
        %176 = sbr.rel (%p174) target = $region20
      $region19: #{tpu_custom_call.1} parent=5 // pred_region
        // Predicated region
        $region21: #{tpu_custom_call.1} parent=19 // pred_check
          %p177 = pneg %p50
        $region22: #{tpu_custom_call.1} parent=19 // pred_check_branch
          %179 = sbr.rel (%p177) target = $region24
        $region23: #{tpu_custom_call.1} parent=19 // pred_region
          %s180 = smul.u32 16, %s30
          %p181 = scmp.lt.s32.totalorder %s180, 31
          %s182 = scalar_select %p181, %s180, 31
          %s183 = smul.addr %s182, 8
          %s184 = scalar_lea.vmem %s3, %s183
          %s185 = smul.u32 16, %s30
        $region24: #{tpu_custom_call.1} parent=19 // pred_fallthru
          _
        // Predicated region
        $region25: #{tpu_custom_call.1} parent=19 // pred_check
          %p186 = pneg %p76
        $region26: #{tpu_custom_call.1} parent=19 // pred_check_branch
          %188 = sbr.rel (%p186) target = $region28
        $region27: #{tpu_custom_call.1} parent=19 // pred_region
          %s189 = smul.u32 16, %s30
          %p190 = scmp.lt.s32.totalorder %s189, 31
          %s191 = scalar_select %p190, %s189, 31
          %s192 = smul.addr %s191, 8
          %s193 = scalar_lea.vmem %s4, %s192
          %s194 = smul.u32 16, %s30
        $region28: #{tpu_custom_call.1} parent=19 // pred_fallthru
          _
        // Predicated region
        $region29: #{tpu_custom_call.1} parent=19 // pred_check
          %p195 = pneg %p102
        $region30: #{tpu_custom_call.1} parent=19 // pred_check_branch
          %197 = sbr.rel (%p195) target = $region32
        $region31: #{tpu_custom_call.1} parent=19 // pred_region
          %s198 = smul.u32 16, %s30
          %p199 = scmp.lt.s32.totalorder %s198, 31
          %s200 = scalar_select %p199, %s198, 31
          %s201 = smul.addr %s200, 8
          %s202 = scalar_lea.vmem %s5, %s201
          %s203 = smul.u32 16, %s30
        $region32: #{tpu_custom_call.1} parent=19 // pred_fallthru
          _
      $region20: #{tpu_custom_call.1} parent=5 // pred_fallthru
        _
      %p204 = scmp.le.s32.totalorder 1, %s30
      %p205 = scmp.lt.s32.totalorder %s30, 3
      %p206 = pnand %p204, %p205
      %p207 = pneg %p206
      // Predicated region
      $region33: #{tpu_custom_call.1} parent=5 // pred_check
        _
      $region34: #{tpu_custom_call.1} parent=5 // pred_check_branch
        %209 = sbr.rel (%p206) target = $region36
      $region35: #{tpu_custom_call.1} parent=5 // pred_region
        %s210 = ssub.s32 %s30, 1
        %s211 = smul.u32 16, %s35
        %p212 = scmp.lt.s32.totalorder %s211, 31
        %s213 = scalar_select %p212, %s211, 31
        %s214 = smul.addr %s213, 8
        %s215 = scalar_lea.vmem %s3, %s214
        %p216 = pneg %p56
        %p217 = pneg %p53
        %s218 = smul.u32 16, %s35
        %p219 = scmp.lt.s32.totalorder %s218, 31
        %s220 = scalar_select %p219, %s218, 31
        %s221 = smul.addr %s220, 8
        %s222 = scalar_lea.vmem %s4, %s221
        %p223 = pneg %p82
        %p224 = pneg %p79
        %s225 = smul.u32 16, %s35
        %p226 = scmp.lt.s32.totalorder %s225, 31
        %s227 = scalar_select %p226, %s225, 31
        %s228 = smul.addr %s227, 8
        %s229 = scalar_lea.vmem %s5, %s228
        %p230 = pneg %p108
        %p231 = pneg %p105
        %p232 = pneg %p129
        %p233 = pneg %p126
        %p234 = pneg %p155
        %p235 = pneg %p152
        %s236 = sand.u32 %s142, 1
        %s237 = scalar_lea.sflag [#allocation9], %s236
        %s238 = sand.u32 %s142, 1
        %s239 = scalar_lea.vmem [#allocation8], %s238
        %s240 = smul.u32 16, %s35
        %p241 = scmp.lt.s32.totalorder %s240, 31
        %s242 = scalar_select %p241, %s240, 31
        %s243 = smul.addr %s242, 8
        %s244 = scalar_lea.vmem %s3, %s243
        %s245 = smul.u32 16, %s35
        %s246 = smul.u32 16, %s35
        %p247 = scmp.lt.s32.totalorder %s246, 31
        %s248 = scalar_select %p247, %s246, 31
        %s249 = smul.addr %s248, 8
        %s250 = scalar_lea.vmem %s4, %s249
        %s251 = smul.u32 16, %s35
        %s252 = smul.u32 16, %s35
        %p253 = scmp.lt.s32.totalorder %s252, 31
        %s254 = scalar_select %p253, %s252, 31
        %s255 = smul.addr %s254, 8
        %s256 = scalar_lea.vmem %s5, %s255
        %s257 = smul.u32 16, %s35
        %s258 = smul.u32 %s35, 128
        %v259 = vld [vmem:[%s244] sm:$0xff]
        %v260 = vld [vmem:[%s244 + $0x8] sm:$0xff]
        %v261 = vld [vmem:[%s244 + $0x10] sm:$0xff]
        %v262 = vld [vmem:[%s244 + $0x18] sm:$0xff]
        %v263 = vld [vmem:[%s244 + $0x20] sm:$0xff]
        %v264 = vld [vmem:[%s244 + $0x28] sm:$0xff]
        %v265 = vld [vmem:[%s244 + $0x30] sm:$0xff]
        %v266 = vld [vmem:[%s244 + $0x38] sm:$0xff]
        %v267 = vld [vmem:[%s244 + $0x40] sm:$0xff]
        %v268 = vld [vmem:[%s244 + $0x48] sm:$0xff]
        %v269 = vld [vmem:[%s244 + $0x50] sm:$0xff]
        %v270 = vld [vmem:[%s244 + $0x58] sm:$0xff]
        %v271 = vld [vmem:[%s244 + $0x60] sm:$0xff]
        %v272 = vld [vmem:[%s244 + $0x68] sm:$0xff]
        %v273 = vld [vmem:[%s244 + $0x70] sm:$0xff]
        %v274 = vld [vmem:[%s244 + $0x78] sm:$0xff]
        %v275 = vld [vmem:[%s250] sm:$0xff]
        %v276 = vld [vmem:[%s250 + $0x8] sm:$0xff]
        %v277 = vld [vmem:[%s250 + $0x10] sm:$0xff]
        %v278 = vld [vmem:[%s250 + $0x18] sm:$0xff]
        %v279 = vld [vmem:[%s250 + $0x20] sm:$0xff]
        %v280 = vld [vmem:[%s250 + $0x28] sm:$0xff]
        %v281 = vld [vmem:[%s250 + $0x30] sm:$0xff]
        %v282 = vld [vmem:[%s250 + $0x38] sm:$0xff]
        %v283 = vld [vmem:[%s250 + $0x40] sm:$0xff]
        %v284 = vld [vmem:[%s250 + $0x48] sm:$0xff]
        %v285 = vld [vmem:[%s250 + $0x50] sm:$0xff]
        %v286 = vld [vmem:[%s250 + $0x58] sm:$0xff]
        %v287 = vld [vmem:[%s250 + $0x60] sm:$0xff]
        %v288 = vld [vmem:[%s250 + $0x68] sm:$0xff]
        %v289 = vld [vmem:[%s250 + $0x70] sm:$0xff]
        %v290 = vld [vmem:[%s250 + $0x78] sm:$0xff]
        %v291 = vsub.f32 %v259, %v275
        %v292 = vsub.f32 %v260, %v276
        %v293 = vsub.f32 %v261, %v277
        %v294 = vsub.f32 %v262, %v278
        %v295 = vsub.f32 %v263, %v279
        %v296 = vsub.f32 %v264, %v280
        %v297 = vsub.f32 %v265, %v281
        %v298 = vsub.f32 %v266, %v282
        %v299 = vsub.f32 %v267, %v283
        %v300 = vsub.f32 %v268, %v284
        %v301 = vsub.f32 %v269, %v285
        %v302 = vsub.f32 %v270, %v286
        %v303 = vsub.f32 %v271, %v287
        %v304 = vsub.f32 %v272, %v288
        %v305 = vsub.f32 %v273, %v289
        %v306 = vsub.f32 %v274, %v290
        %vm307 = vcmask 261120
        %308 = vst.msk [vmem:[#allocation2] sm:$0xff] %vm307, %v291
        %309 = vst.msk [vmem:[#allocation2 + $0x8] sm:$0xff] %vm307, %v292
        %310 = vst.msk [vmem:[#allocation2 + $0x10] sm:$0xff] %vm307, %v293
        %311 = vst.msk [vmem:[#allocation2 + $0x18] sm:$0xff] %vm307, %v294
        %312 = vst.msk [vmem:[#allocation2 + $0x20] sm:$0xff] %vm307, %v295
        %313 = vst.msk [vmem:[#allocation2 + $0x28] sm:$0xff] %vm307, %v296
        %314 = vst.msk [vmem:[#allocation2 + $0x30] sm:$0xff] %vm307, %v297
        %315 = vst.msk [vmem:[#allocation2 + $0x38] sm:$0xff] %vm307, %v298
        %316 = vst.msk [vmem:[#allocation2 + $0x40] sm:$0xff] %vm307, %v299
        %317 = vst.msk [vmem:[#allocation2 + $0x48] sm:$0xff] %vm307, %v300
        %318 = vst.msk [vmem:[#allocation2 + $0x50] sm:$0xff] %vm307, %v301
        %319 = vst.msk [vmem:[#allocation2 + $0x58] sm:$0xff] %vm307, %v302
        %320 = vst.msk [vmem:[#allocation2 + $0x60] sm:$0xff] %vm307, %v303
        %321 = vst.msk [vmem:[#allocation2 + $0x68] sm:$0xff] %vm307, %v304
        %322 = vst.msk [vmem:[#allocation2 + $0x70] sm:$0xff] %vm307, %v305
        %323 = vst.msk [vmem:[#allocation2 + $0x78] sm:$0xff] %vm307, %v306
        %324 = vst.msk [vmem:[#allocation3] sm:$0xff] %vm307, 0.0
        %325 = vst.msk [vmem:[#allocation3 + $0x8] sm:$0xff] %vm307, 0.0
        %326 = vst.msk [vmem:[#allocation3 + $0x10] sm:$0xff] %vm307, 0.0
        %327 = vst.msk [vmem:[#allocation3 + $0x18] sm:$0xff] %vm307, 0.0
        %328 = vst.msk [vmem:[#allocation3 + $0x20] sm:$0xff] %vm307, 0.0
        %329 = vst.msk [vmem:[#allocation3 + $0x28] sm:$0xff] %vm307, 0.0
        %330 = vst.msk [vmem:[#allocation3 + $0x30] sm:$0xff] %vm307, 0.0
        %331 = vst.msk [vmem:[#allocation3 + $0x38] sm:$0xff] %vm307, 0.0
        %332 = vst.msk [vmem:[#allocation3 + $0x40] sm:$0xff] %vm307, 0.0
        %333 = vst.msk [vmem:[#allocation3 + $0x48] sm:$0xff] %vm307, 0.0
        %334 = vst.msk [vmem:[#allocation3 + $0x50] sm:$0xff] %vm307, 0.0
        %335 = vst.msk [vmem:[#allocation3 + $0x58] sm:$0xff] %vm307, 0.0
        %336 = vst.msk [vmem:[#allocation3 + $0x60] sm:$0xff] %vm307, 0.0
        %337 = vst.msk [vmem:[#allocation3 + $0x68] sm:$0xff] %vm307, 0.0
        %338 = vst.msk [vmem:[#allocation3 + $0x70] sm:$0xff] %vm307, 0.0
        %339 = vst.msk [vmem:[#allocation3 + $0x78] sm:$0xff] %vm307, 0.0
        %s340 = sld [smem:[#allocation5 + %s35]]
        %s341 = sld [smem:[#allocation6 + %s35]]
        %s342 = sadd.s32 %s341, 1
        // While loop
        $region37: #{tpu_custom_call.1} parent=35 // loop_pre_header
          _
        $region38: #{tpu_custom_call.1} parent=35 // loop_header
          %s344 = sphi %s340, %s346
          %p345 = scmp.ge.s32.totalorder %s344, %s342
        $region39: #{tpu_custom_call.1} parent=35 // loop_header_branch
          %348 = sbr.rel (%p345) target = $region43
        $region40: #{tpu_custom_call.1} parent=35 // loop_body
          %v349 = vld [vmem:[#allocation2] sm:$0xff]
          %v350 = vld [vmem:[#allocation2 + $0x8] sm:$0xff]
          %v351 = vld [vmem:[#allocation2 + $0x10] sm:$0xff]
          %v352 = vld [vmem:[#allocation2 + $0x18] sm:$0xff]
          %v353 = vld [vmem:[#allocation2 + $0x20] sm:$0xff]
          %v354 = vld [vmem:[#allocation2 + $0x28] sm:$0xff]
          %v355 = vld [vmem:[#allocation2 + $0x30] sm:$0xff]
          %v356 = vld [vmem:[#allocation2 + $0x38] sm:$0xff]
          %v357 = vld [vmem:[#allocation2 + $0x40] sm:$0xff]
          %v358 = vld [vmem:[#allocation2 + $0x48] sm:$0xff]
          %v359 = vld [vmem:[#allocation2 + $0x50] sm:$0xff]
          %v360 = vld [vmem:[#allocation2 + $0x58] sm:$0xff]
          %v361 = vld [vmem:[#allocation2 + $0x60] sm:$0xff]
          %v362 = vld [vmem:[#allocation2 + $0x68] sm:$0xff]
          %v363 = vld [vmem:[#allocation2 + $0x70] sm:$0xff]
          %v364 = vld [vmem:[#allocation2 + $0x78] sm:$0xff]
          %s365 = smul.u32 %s344, 32
          %s366 = scalar_lea.vmem %s6, %s365
          %v367 = vld [vmem:[%s366] sm:$0xff]
          %v368 = vld [vmem:[%s366 + $0x8] sm:$0xff]
          %v369 = vld [vmem:[%s366 + $0x10] sm:$0xff]
          %v370 = vld [vmem:[%s366 + $0x18] sm:$0xff]
          %v372 = vsel %vm307, %v349, 0
          %v375 = vsel %vm307, %v350, 0
          %v378 = vsel %vm307, %v351, 0
          %v381 = vsel %vm307, %v352, 0
          %v384 = vsel %vm307, %v353, 0
          %v387 = vsel %vm307, %v354, 0
          %v390 = vsel %vm307, %v355, 0
          %v393 = vsel %vm307, %v356, 0
          %v396 = vsel %vm307, %v357, 0
          %v399 = vsel %vm307, %v358, 0
          %v402 = vsel %vm307, %v359, 0
          %v405 = vsel %vm307, %v360, 0
          %v408 = vsel %vm307, %v361, 0
          %v411 = vsel %vm307, %v362, 0
          %v414 = vsel %vm307, %v363, 0
          %v417 = vsel %vm307, %v364, 0
          %419 = vmatprep.subr.mxu0 0.0
          %420 = vmatpush1.msra.mxu0 0.0
          %421 = vmatprep.subr.mxu0 0.0
          %422 = vmatpush1.msra.mxu0 0.0
          %423 = vmatprep.subr.mxu0 0.0
          %424 = vmatpush1.msra.mxu0 0.0
          %425 = vmatprep.subr.mxu0 0.0
          %426 = vmatpush1.msra.mxu0 0.0
          %427 = vmatprep.subr.mxu0 0.0
          %428 = vmatpush1.msra.mxu0 0.0
          %429 = vmatprep.subr.mxu0 0.0
          %430 = vmatpush1.msra.mxu0 0.0
          %431 = vmatprep.subr.mxu0 0.0
          %432 = vmatpush1.msra.mxu0 0.0
          %433 = vmatprep.subr.mxu0 0.0
          %434 = vmatpush1.msra.mxu0 0.0
          %435 = vmatprep.subr.mxu0 0.0
          %436 = vmatpush1.msra.mxu0 0.0
          %437 = vmatprep.subr.mxu0 0.0
          %438 = vmatpush1.msra.mxu0 0.0
          %439 = vmatprep.subr.mxu0 0.0
          %440 = vmatpush1.msra.mxu0 0.0
          %441 = vmatprep.subr.mxu0 0.0
          %442 = vmatpush1.msra.mxu0 0.0
          %443 = vmatprep.subr.mxu0 0.0
          %444 = vmatpush1.msra.mxu0 %v370
          %445 = vmatprep.subr.mxu0 0.0
          %446 = vmatpush1.msra.mxu0 %v369
          %447 = vmatprep.subr.mxu0 0.0
          %448 = vmatpush1.msra.mxu0 %v368
          %449 = vmatprep.subr.mxu0 0.0
          %450 = vmatpush1.msra.mxu0 %v367
          %451 = vmatprep.subr.mxu0 0.0
          %452 = vmatpush2.msra.mxu0 0.0
          %453 = vmatprep.subr.mxu0 0.0
          %454 = vmatpush2.msra.mxu0 0.0
          %455 = vmatprep.subr.mxu0 0.0
          %456 = vmatpush2.msra.mxu0 0.0
          %457 = vmatprep.subr.mxu0 0.0
          %458 = vmatpush2.msra.mxu0 0.0
          %459 = vmatprep.subr.mxu0 0.0
          %460 = vmatpush2.msra.mxu0 0.0
          %461 = vmatprep.subr.mxu0 0.0
          %462 = vmatpush2.msra.mxu0 0.0
          %463 = vmatprep.subr.mxu0 0.0
          %464 = vmatpush2.msra.mxu0 0.0
          %465 = vmatprep.subr.mxu0 0.0
          %466 = vmatpush2.msra.mxu0 0.0
          %467 = vmatprep.subr.mxu0 0.0
          %468 = vmatpush2.msra.mxu0 0.0
          %469 = vmatprep.subr.mxu0 0.0
          %470 = vmatpush2.msra.mxu0 0.0
          %471 = vmatprep.subr.mxu0 0.0
          %472 = vmatpush2.msra.mxu0 0.0
          %473 = vmatprep.subr.mxu0 0.0
          %474 = vmatpush2.msra.mxu0 0.0
          %475 = vmatprep.subr.mxu0 0.0
          %476 = vmatpush2.msra.mxu0 0.0
          %477 = vmatprep.subr.mxu0 0.0
          %478 = vmatpush2.msra.mxu0 0.0
          %479 = vmatprep.subr.mxu0 0.0
          %480 = vmatpush2.msra.mxu0 0.0
          %481 = vmatprep.subr.mxu0 0.0
          %482 = vmatpush2.msra.mxu0 0.0
          %483 = vmatprep.mubr.f32.mxu0 0.0
          %484 = vmatmul.mubr.f32.gmra.mxu0 %v372
          %v485 = vpop.f32.mrf.mxu0
          %v486 = vadd.f32 0.0, %v485
          %v487 = vpop.f32.mrf.mxu0
          %488 = vmatprep.mubr.f32.mxu0 0.0
          %489 = vmatmul.mubr.f32.gmra.mxu0 %v375
          %v490 = vpop.f32.mrf.mxu0
          %v491 = vadd.f32 0.0, %v490
          %v492 = vpop.f32.mrf.mxu0
          %493 = vmatprep.mubr.f32.mxu0 0.0
          %494 = vmatmul.mubr.f32.gmra.mxu0 %v378
          %v495 = vpop.f32.mrf.mxu0
          %v496 = vadd.f32 0.0, %v495
          %v497 = vpop.f32.mrf.mxu0
          %498 = vmatprep.mubr.f32.mxu0 0.0
          %499 = vmatmul.mubr.f32.gmra.mxu0 %v381
          %v500 = vpop.f32.mrf.mxu0
          %v501 = vadd.f32 0.0, %v500
          %v502 = vpop.f32.mrf.mxu0
          %503 = vmatprep.mubr.f32.mxu0 0.0
          %504 = vmatmul.mubr.f32.gmra.mxu0 %v384
          %v505 = vpop.f32.mrf.mxu0
          %v506 = vadd.f32 0.0, %v505
          %v507 = vpop.f32.mrf.mxu0
          %508 = vmatprep.mubr.f32.mxu0 0.0
          %509 = vmatmul.mubr.f32.gmra.mxu0 %v387
          %v510 = vpop.f32.mrf.mxu0
          %v511 = vadd.f32 0.0, %v510
          %v512 = vpop.f32.mrf.mxu0
          %513 = vmatprep.mubr.f32.mxu0 0.0
          %514 = vmatmul.mubr.f32.gmra.mxu0 %v390
          %v515 = vpop.f32.mrf.mxu0
          %v516 = vadd.f32 0.0, %v515
          %v517 = vpop.f32.mrf.mxu0
          %518 = vmatprep.mubr.f32.mxu0 0.0
          %519 = vmatmul.mubr.f32.gmra.mxu0 %v393
          %v520 = vpop.f32.mrf.mxu0
          %v521 = vadd.f32 0.0, %v520
          %v522 = vpop.f32.mrf.mxu0
          %523 = vmatprep.mubr.f32.mxu0 0.0
          %524 = vmatmul.mubr.f32.gmra.mxu0 %v396
          %v525 = vpop.f32.mrf.mxu0
          %v526 = vadd.f32 0.0, %v525
          %v527 = vpop.f32.mrf.mxu0
          %528 = vmatprep.mubr.f32.mxu0 0.0
          %529 = vmatmul.mubr.f32.gmra.mxu0 %v399
          %v530 = vpop.f32.mrf.mxu0
          %v531 = vadd.f32 0.0, %v530
          %v532 = vpop.f32.mrf.mxu0
          %533 = vmatprep.mubr.f32.mxu0 0.0
          %534 = vmatmul.mubr.f32.gmra.mxu0 %v402
          %v535 = vpop.f32.mrf.mxu0
          %v536 = vadd.f32 0.0, %v535
          %v537 = vpop.f32.mrf.mxu0
          %538 = vmatprep.mubr.f32.mxu0 0.0
          %539 = vmatmul.mubr.f32.gmra.mxu0 %v405
          %v540 = vpop.f32.mrf.mxu0
          %v541 = vadd.f32 0.0, %v540
          %v542 = vpop.f32.mrf.mxu0
          %543 = vmatprep.mubr.f32.mxu0 0.0
          %544 = vmatmul.mubr.f32.gmra.mxu0 %v408
          %v545 = vpop.f32.mrf.mxu0
          %v546 = vadd.f32 0.0, %v545
          %v547 = vpop.f32.mrf.mxu0
          %548 = vmatprep.mubr.f32.mxu0 0.0
          %549 = vmatmul.mubr.f32.gmra.mxu0 %v411
          %v550 = vpop.f32.mrf.mxu0
          %v551 = vadd.f32 0.0, %v550
          %v552 = vpop.f32.mrf.mxu0
          %553 = vmatprep.mubr.f32.mxu0 0.0
          %554 = vmatmul.mubr.f32.gmra.mxu0 %v414
          %v555 = vpop.f32.mrf.mxu0
          %v556 = vadd.f32 0.0, %v555
          %v557 = vpop.f32.mrf.mxu0
          %558 = vmatprep.mubr.f32.mxu0 0.0
          %559 = vmatmul.mubr.f32.gmra.mxu0 %v417
          %v560 = vpop.f32.mrf.mxu0
          %v561 = vadd.f32 0.0, %v560
          %v562 = vpop.f32.mrf.mxu0
          %563 = vdwg.mxu0
          %v564 = vlaneseq
          %v565 = vshrl.u32 %v564, 7
          %v566 = vadd.s32 %v565, 8
          %v567 = vadd.s32 %v565, 16
          %v568 = vadd.s32 %v565, 24
          %v569 = vadd.s32 %v565, 32
          %v570 = vadd.s32 %v565, 40
          %v571 = vadd.s32 %v565, 48
          %v572 = vadd.s32 %v565, 56
          %v573 = vadd.s32 %v565, 64
          %v574 = vadd.s32 %v565, 72
          %v575 = vadd.s32 %v565, 80
          %v576 = vadd.s32 %v565, 88
          %v577 = vadd.s32 %v565, 96
          %v578 = vadd.s32 %v565, 104
          %v579 = vadd.s32 %v565, 112
          %v580 = vadd.s32 %v565, 120
          %v581 = vstv %s258
          %v582 = vadd.s32 %v565, %v581
          %v583 = vadd.s32 %v566, %v581
          %v584 = vadd.s32 %v567, %v581
          %v585 = vadd.s32 %v568, %v581
          %v586 = vadd.s32 %v569, %v581
          %v587 = vadd.s32 %v570, %v581
          %v588 = vadd.s32 %v571, %v581
          %v589 = vadd.s32 %v572, %v581
          %v590 = vadd.s32 %v573, %v581
          %v591 = vadd.s32 %v574, %v581
          %v592 = vadd.s32 %v575, %v581
          %v593 = vadd.s32 %v576, %v581
          %v594 = vadd.s32 %v577, %v581
          %v595 = vadd.s32 %v578, %v581
          %v596 = vadd.s32 %v579, %v581
          %v597 = vadd.s32 %v580, %v581
          %s598 = sld [smem:[#allocation7 + %s344]]
          %v599 = vstv %s598
          %vm600 = vcmp.ge.s32.totalorder %v582, %v599
          %vm601 = vcmp.ge.s32.totalorder %v583, %v599
          %vm602 = vcmp.ge.s32.totalorder %v584, %v599
          %vm603 = vcmp.ge.s32.totalorder %v585, %v599
          %vm604 = vcmp.ge.s32.totalorder %v586, %v599
          %vm605 = vcmp.ge.s32.totalorder %v587, %v599
          %vm606 = vcmp.ge.s32.totalorder %v588, %v599
          %vm607 = vcmp.ge.s32.totalorder %v589, %v599
          %vm608 = vcmp.ge.s32.totalorder %v590, %v599
          %vm609 = vcmp.ge.s32.totalorder %v591, %v599
          %vm610 = vcmp.ge.s32.totalorder %v592, %v599
          %vm611 = vcmp.ge.s32.totalorder %v593, %v599
          %vm612 = vcmp.ge.s32.totalorder %v594, %v599
          %vm613 = vcmp.ge.s32.totalorder %v595, %v599
          %vm614 = vcmp.ge.s32.totalorder %v596, %v599
          %vm615 = vcmp.ge.s32.totalorder %v597, %v599
          %s616 = sadd.s32 %s344, 1
          %s617 = sld [smem:[#allocation7 + %s616]]
          %v618 = vstv %s617
          %vm619 = vcmp.lt.s32.totalorder %v582, %v618
          %vm620 = vcmp.lt.s32.totalorder %v583, %v618
          %vm621 = vcmp.lt.s32.totalorder %v584, %v618
          %vm622 = vcmp.lt.s32.totalorder %v585, %v618
          %vm623 = vcmp.lt.s32.totalorder %v586, %v618
          %vm624 = vcmp.lt.s32.totalorder %v587, %v618
          %vm625 = vcmp.lt.s32.totalorder %v588, %v618
          %vm626 = vcmp.lt.s32.totalorder %v589, %v618
          %vm627 = vcmp.lt.s32.totalorder %v590, %v618
          %vm628 = vcmp.lt.s32.totalorder %v591, %v618
          %vm629 = vcmp.lt.s32.totalorder %v592, %v618
          %vm630 = vcmp.lt.s32.totalorder %v593, %v618
          %vm631 = vcmp.lt.s32.totalorder %v594, %v618
          %vm632 = vcmp.lt.s32.totalorder %v595, %v618
          %vm633 = vcmp.lt.s32.totalorder %v596, %v618
          %vm634 = vcmp.lt.s32.totalorder %v597, %v618
          %vm635 = vmand %vm600, %vm619
          %vm636 = vmand %vm601, %vm620
          %vm637 = vmand %vm602, %vm621
          %vm638 = vmand %vm603, %vm622
          %vm639 = vmand %vm604, %vm623
          %vm640 = vmand %vm605, %vm624
          %vm641 = vmand %vm606, %vm625
          %vm642 = vmand %vm607, %vm626
          %vm643 = vmand %vm608, %vm627
          %vm644 = vmand %vm609, %vm628
          %vm645 = vmand %vm610, %vm629
          %vm646 = vmand %vm611, %vm630
          %vm647 = vmand %vm612, %vm631
          %vm648 = vmand %vm613, %vm632
          %vm649 = vmand %vm614, %vm633
          %vm650 = vmand %vm615, %vm634
          %v651 = vld [vmem:[#allocation3] sm:$0xff]
          %v652 = vld [vmem:[#allocation3 + $0x8] sm:$0xff]
          %v653 = vld [vmem:[#allocation3 + $0x10] sm:$0xff]
          %v654 = vld [vmem:[#allocation3 + $0x18] sm:$0xff]
          %v655 = vld [vmem:[#allocation3 + $0x20] sm:$0xff]
          %v656 = vld [vmem:[#allocation3 + $0x28] sm:$0xff]
          %v657 = vld [vmem:[#allocation3 + $0x30] sm:$0xff]
          %v658 = vld [vmem:[#allocation3 + $0x38] sm:$0xff]
          %v659 = vld [vmem:[#allocation3 + $0x40] sm:$0xff]
          %v660 = vld [vmem:[#allocation3 + $0x48] sm:$0xff]
          %v661 = vld [vmem:[#allocation3 + $0x50] sm:$0xff]
          %v662 = vld [vmem:[#allocation3 + $0x58] sm:$0xff]
          %v663 = vld [vmem:[#allocation3 + $0x60] sm:$0xff]
          %v664 = vld [vmem:[#allocation3 + $0x68] sm:$0xff]
          %v665 = vld [vmem:[#allocation3 + $0x70] sm:$0xff]
          %v666 = vld [vmem:[#allocation3 + $0x78] sm:$0xff]
          %v667 = vsel %vm635, 1, 0
          %v668 = vsel %vm636, 1, 0
          %v669 = vsel %vm637, 1, 0
          %v670 = vsel %vm638, 1, 0
          %v671 = vsel %vm639, 1, 0
          %v672 = vsel %vm640, 1, 0
          %v673 = vsel %vm641, 1, 0
          %v674 = vsel %vm642, 1, 0
          %v675 = vsel %vm643, 1, 0
          %v676 = vsel %vm644, 1, 0
          %v677 = vsel %vm645, 1, 0
          %v678 = vsel %vm646, 1, 0
          %v679 = vsel %vm647, 1, 0
          %v680 = vsel %vm648, 1, 0
          %v681 = vsel %vm649, 1, 0
          %v682 = vsel %vm650, 1, 0
          %vm683 = vcmp.eq.s32.totalorder %v667, 1
          %vm684 = vcmp.eq.s32.totalorder %v668, 1
          %vm685 = vcmp.eq.s32.totalorder %v669, 1
          %vm686 = vcmp.eq.s32.totalorder %v670, 1
          %vm687 = vcmp.eq.s32.totalorder %v671, 1
          %vm688 = vcmp.eq.s32.totalorder %v672, 1
          %vm689 = vcmp.eq.s32.totalorder %v673, 1
          %vm690 = vcmp.eq.s32.totalorder %v674, 1
          %vm691 = vcmp.eq.s32.totalorder %v675, 1
          %vm692 = vcmp.eq.s32.totalorder %v676, 1
          %vm693 = vcmp.eq.s32.totalorder %v677, 1
          %vm694 = vcmp.eq.s32.totalorder %v678, 1
          %vm695 = vcmp.eq.s32.totalorder %v679, 1
          %vm696 = vcmp.eq.s32.totalorder %v680, 1
          %vm697 = vcmp.eq.s32.totalorder %v681, 1
          %vm698 = vcmp.eq.s32.totalorder %v682, 1
          %v699 = vsel %vm683, %v486, %v651
          %v700 = vsel %vm684, %v491, %v652
          %v701 = vsel %vm685, %v496, %v653
          %v702 = vsel %vm686, %v501, %v654
          %v703 = vsel %vm687, %v506, %v655
          %v704 = vsel %vm688, %v511, %v656
          %v705 = vsel %vm689, %v516, %v657
          %v706 = vsel %vm690, %v521, %v658
          %v707 = vsel %vm691, %v526, %v659
          %v708 = vsel %vm692, %v531, %v660
          %v709 = vsel %vm693, %v536, %v661
          %v710 = vsel %vm694, %v541, %v662
          %v711 = vsel %vm695, %v546, %v663
          %v712 = vsel %vm696, %v551, %v664
          %v713 = vsel %vm697, %v556, %v665
          %v714 = vsel %vm698, %v561, %v666
          %715 = vst.msk [vmem:[#allocation3] sm:$0xff] %vm307, %v699
          %716 = vst.msk [vmem:[#allocation3 + $0x8] sm:$0xff] %vm307, %v700
          %717 = vst.msk [vmem:[#allocation3 + $0x10] sm:$0xff] %vm307, %v701
          %718 = vst.msk [vmem:[#allocation3 + $0x18] sm:$0xff] %vm307, %v702
          %719 = vst.msk [vmem:[#allocation3 + $0x20] sm:$0xff] %vm307, %v703
          %720 = vst.msk [vmem:[#allocation3 + $0x28] sm:$0xff] %vm307, %v704
          %721 = vst.msk [vmem:[#allocation3 + $0x30] sm:$0xff] %vm307, %v705
          %722 = vst.msk [vmem:[#allocation3 + $0x38] sm:$0xff] %vm307, %v706
          %723 = vst.msk [vmem:[#allocation3 + $0x40] sm:$0xff] %vm307, %v707
          %724 = vst.msk [vmem:[#allocation3 + $0x48] sm:$0xff] %vm307, %v708
          %725 = vst.msk [vmem:[#allocation3 + $0x50] sm:$0xff] %vm307, %v709
          %726 = vst.msk [vmem:[#allocation3 + $0x58] sm:$0xff] %vm307, %v710
          %727 = vst.msk [vmem:[#allocation3 + $0x60] sm:$0xff] %vm307, %v711
          %728 = vst.msk [vmem:[#allocation3 + $0x68] sm:$0xff] %vm307, %v712
          %729 = vst.msk [vmem:[#allocation3 + $0x70] sm:$0xff] %vm307, %v713
          %730 = vst.msk [vmem:[#allocation3 + $0x78] sm:$0xff] %vm307, %v714
        $region41: #{tpu_custom_call.1} parent=35 // loop_footer
          %s346 = sadd.s32 %s344, 1
        $region42: #{tpu_custom_call.1} parent=35 // loop_footer_branch
          %343 = sbr.rel target = $region38
        $region43: #{tpu_custom_call.1} parent=35 // loop_exit
          _
        %v731 = vld [vmem:[#allocation3] sm:$0xff]
        %v732 = vld [vmem:[#allocation3 + $0x8] sm:$0xff]
        %v733 = vld [vmem:[#allocation3 + $0x10] sm:$0xff]
        %v734 = vld [vmem:[#allocation3 + $0x18] sm:$0xff]
        %v735 = vld [vmem:[#allocation3 + $0x20] sm:$0xff]
        %v736 = vld [vmem:[#allocation3 + $0x28] sm:$0xff]
        %v737 = vld [vmem:[#allocation3 + $0x30] sm:$0xff]
        %v738 = vld [vmem:[#allocation3 + $0x38] sm:$0xff]
        %v739 = vld [vmem:[#allocation3 + $0x40] sm:$0xff]
        %v740 = vld [vmem:[#allocation3 + $0x48] sm:$0xff]
        %v741 = vld [vmem:[#allocation3 + $0x50] sm:$0xff]
        %v742 = vld [vmem:[#allocation3 + $0x58] sm:$0xff]
        %v743 = vld [vmem:[#allocation3 + $0x60] sm:$0xff]
        %v744 = vld [vmem:[#allocation3 + $0x68] sm:$0xff]
        %v745 = vld [vmem:[#allocation3 + $0x70] sm:$0xff]
        %v746 = vld [vmem:[#allocation3 + $0x78] sm:$0xff]
        %v747 = vld [vmem:[%s256] sm:$0xff]
        %v748 = vld [vmem:[%s256 + $0x8] sm:$0xff]
        %v749 = vld [vmem:[%s256 + $0x10] sm:$0xff]
        %v750 = vld [vmem:[%s256 + $0x18] sm:$0xff]
        %v751 = vld [vmem:[%s256 + $0x20] sm:$0xff]
        %v752 = vld [vmem:[%s256 + $0x28] sm:$0xff]
        %v753 = vld [vmem:[%s256 + $0x30] sm:$0xff]
        %v754 = vld [vmem:[%s256 + $0x38] sm:$0xff]
        %v755 = vld [vmem:[%s256 + $0x40] sm:$0xff]
        %v756 = vld [vmem:[%s256 + $0x48] sm:$0xff]
        %v757 = vld [vmem:[%s256 + $0x50] sm:$0xff]
        %v758 = vld [vmem:[%s256 + $0x58] sm:$0xff]
        %v759 = vld [vmem:[%s256 + $0x60] sm:$0xff]
        %v760 = vld [vmem:[%s256 + $0x68] sm:$0xff]
        %v761 = vld [vmem:[%s256 + $0x70] sm:$0xff]
        %v762 = vld [vmem:[%s256 + $0x78] sm:$0xff]
        %v763 = vadd.f32 %v731, %v747
        %v764 = vadd.f32 %v732, %v748
        %v765 = vadd.f32 %v733, %v749
        %v766 = vadd.f32 %v734, %v750
        %v767 = vadd.f32 %v735, %v751
        %v768 = vadd.f32 %v736, %v752
        %v769 = vadd.f32 %v737, %v753
        %v770 = vadd.f32 %v738, %v754
        %v771 = vadd.f32 %v739, %v755
        %v772 = vadd.f32 %v740, %v756
        %v773 = vadd.f32 %v741, %v757
        %v774 = vadd.f32 %v742, %v758
        %v775 = vadd.f32 %v743, %v759
        %v776 = vadd.f32 %v744, %v760
        %v777 = vadd.f32 %v745, %v761
        %v778 = vadd.f32 %v746, %v762
        %v779 = vmul.f32 %v763, %v763
        %v780 = vmul.f32 %v764, %v764
        %v781 = vmul.f32 %v765, %v765
        %v782 = vmul.f32 %v766, %v766
        %v783 = vmul.f32 %v767, %v767
        %v784 = vmul.f32 %v768, %v768
        %v785 = vmul.f32 %v769, %v769
        %v786 = vmul.f32 %v770, %v770
        %v787 = vmul.f32 %v771, %v771
        %v788 = vmul.f32 %v772, %v772
        %v789 = vmul.f32 %v773, %v773
        %v790 = vmul.f32 %v774, %v774
        %v791 = vmul.f32 %v775, %v775
        %v792 = vmul.f32 %v776, %v776
        %v793 = vmul.f32 %v777, %v777
        %v794 = vmul.f32 %v778, %v778
        %v795 = vsel %vm307, %v779, 0.0
        %796 = vadd.xlane.f32.xlu0 %v795
        %v797 = vpop.xlane.xlu0 %796
        %v798 = vsel %vm307, %v780, 0.0
        %799 = vadd.xlane.f32.xlu0 %v798
        %v800 = vpop.xlane.xlu0 %799
        %v801 = vsel %vm307, %v781, 0.0
        %802 = vadd.xlane.f32.xlu0 %v801
        %v803 = vpop.xlane.xlu0 %802
        %v804 = vsel %vm307, %v782, 0.0
        %805 = vadd.xlane.f32.xlu0 %v804
        %v806 = vpop.xlane.xlu0 %805
        %v807 = vsel %vm307, %v783, 0.0
        %808 = vadd.xlane.f32.xlu0 %v807
        %v809 = vpop.xlane.xlu0 %808
        %v810 = vsel %vm307, %v784, 0.0
        %811 = vadd.xlane.f32.xlu0 %v810
        %v812 = vpop.xlane.xlu0 %811
        %v813 = vsel %vm307, %v785, 0.0
        %814 = vadd.xlane.f32.xlu0 %v813
        %v815 = vpop.xlane.xlu0 %814
        %v816 = vsel %vm307, %v786, 0.0
        %817 = vadd.xlane.f32.xlu0 %v816
        %v818 = vpop.xlane.xlu0 %817
        %v819 = vsel %vm307, %v787, 0.0
        %820 = vadd.xlane.f32.xlu0 %v819
        %v821 = vpop.xlane.xlu0 %820
        %v822 = vsel %vm307, %v788, 0.0
        %823 = vadd.xlane.f32.xlu0 %v822
        %v824 = vpop.xlane.xlu0 %823
        %v825 = vsel %vm307, %v789, 0.0
        %826 = vadd.xlane.f32.xlu0 %v825
        %v827 = vpop.xlane.xlu0 %826
        %v828 = vsel %vm307, %v790, 0.0
        %829 = vadd.xlane.f32.xlu0 %v828
        %v830 = vpop.xlane.xlu0 %829
        %v831 = vsel %vm307, %v791, 0.0
        %832 = vadd.xlane.f32.xlu0 %v831
        %v833 = vpop.xlane.xlu0 %832
        %v834 = vsel %vm307, %v792, 0.0
        %835 = vadd.xlane.f32.xlu0 %v834
        %v836 = vpop.xlane.xlu0 %835
        %v837 = vsel %vm307, %v793, 0.0
        %838 = vadd.xlane.f32.xlu0 %v837
        %v839 = vpop.xlane.xlu0 %838
        %v840 = vsel %vm307, %v794, 0.0
        %841 = vadd.xlane.f32.xlu0 %v840
        %v842 = vpop.xlane.xlu0 %841
        %v843 = vrsqrt.pop %v797
        %v844 = vmul.f32 %v797, %v843
        %vm845 = vcmp.eq.f32.partialorder %v797, inf
        %v846 = vsel %vm845, %v797, %v844
        %vm847 = vcmp.eq.f32.partialorder %v797, 0.0
        %v848 = vand.u32 %v797, 2147483648
        %v849 = vsel %vm847, %v848, %v846
        %v850 = vrsqrt.pop %v800
        %v851 = vmul.f32 %v800, %v850
        %vm852 = vcmp.eq.f32.partialorder %v800, inf
        %v853 = vsel %vm852, %v800, %v851
        %vm854 = vcmp.eq.f32.partialorder %v800, 0.0
        %v855 = vand.u32 %v800, 2147483648
        %v856 = vsel %vm854, %v855, %v853
        %v857 = vrsqrt.pop %v803
        %v858 = vmul.f32 %v803, %v857
        %vm859 = vcmp.eq.f32.partialorder %v803, inf
        %v860 = vsel %vm859, %v803, %v858
        %vm861 = vcmp.eq.f32.partialorder %v803, 0.0
        %v862 = vand.u32 %v803, 2147483648
        %v863 = vsel %vm861, %v862, %v860
        %v864 = vrsqrt.pop %v806
        %v865 = vmul.f32 %v806, %v864
        %vm866 = vcmp.eq.f32.partialorder %v806, inf
        %v867 = vsel %vm866, %v806, %v865
        %vm868 = vcmp.eq.f32.partialorder %v806, 0.0
        %v869 = vand.u32 %v806, 2147483648
        %v870 = vsel %vm868, %v869, %v867
        %v871 = vrsqrt.pop %v809
        %v872 = vmul.f32 %v809, %v871
        %vm873 = vcmp.eq.f32.partialorder %v809, inf
        %v874 = vsel %vm873, %v809, %v872
        %vm875 = vcmp.eq.f32.partialorder %v809, 0.0
        %v876 = vand.u32 %v809, 2147483648
        %v877 = vsel %vm875, %v876, %v874
        %v878 = vrsqrt.pop %v812
        %v879 = vmul.f32 %v812, %v878
        %vm880 = vcmp.eq.f32.partialorder %v812, inf
        %v881 = vsel %vm880, %v812, %v879
        %vm882 = vcmp.eq.f32.partialorder %v812, 0.0
        %v883 = vand.u32 %v812, 2147483648
        %v884 = vsel %vm882, %v883, %v881
        %v885 = vrsqrt.pop %v815
        %v886 = vmul.f32 %v815, %v885
        %vm887 = vcmp.eq.f32.partialorder %v815, inf
        %v888 = vsel %vm887, %v815, %v886
        %vm889 = vcmp.eq.f32.partialorder %v815, 0.0
        %v890 = vand.u32 %v815, 2147483648
        %v891 = vsel %vm889, %v890, %v888
        %v892 = vrsqrt.pop %v818
        %v893 = vmul.f32 %v818, %v892
        %vm894 = vcmp.eq.f32.partialorder %v818, inf
        %v895 = vsel %vm894, %v818, %v893
        %vm896 = vcmp.eq.f32.partialorder %v818, 0.0
        %v897 = vand.u32 %v818, 2147483648
        %v898 = vsel %vm896, %v897, %v895
        %v899 = vrsqrt.pop %v821
        %v900 = vmul.f32 %v821, %v899
        %vm901 = vcmp.eq.f32.partialorder %v821, inf
        %v902 = vsel %vm901, %v821, %v900
        %vm903 = vcmp.eq.f32.partialorder %v821, 0.0
        %v904 = vand.u32 %v821, 2147483648
        %v905 = vsel %vm903, %v904, %v902
        %v906 = vrsqrt.pop %v824
        %v907 = vmul.f32 %v824, %v906
        %vm908 = vcmp.eq.f32.partialorder %v824, inf
        %v909 = vsel %vm908, %v824, %v907
        %vm910 = vcmp.eq.f32.partialorder %v824, 0.0
        %v911 = vand.u32 %v824, 2147483648
        %v912 = vsel %vm910, %v911, %v909
        %v913 = vrsqrt.pop %v827
        %v914 = vmul.f32 %v827, %v913
        %vm915 = vcmp.eq.f32.partialorder %v827, inf
        %v916 = vsel %vm915, %v827, %v914
        %vm917 = vcmp.eq.f32.partialorder %v827, 0.0
        %v918 = vand.u32 %v827, 2147483648
        %v919 = vsel %vm917, %v918, %v916
        %v920 = vrsqrt.pop %v830
        %v921 = vmul.f32 %v830, %v920
        %vm922 = vcmp.eq.f32.partialorder %v830, inf
        %v923 = vsel %vm922, %v830, %v921
        %vm924 = vcmp.eq.f32.partialorder %v830, 0.0
        %v925 = vand.u32 %v830, 2147483648
        %v926 = vsel %vm924, %v925, %v923
        %v927 = vrsqrt.pop %v833
        %v928 = vmul.f32 %v833, %v927
        %vm929 = vcmp.eq.f32.partialorder %v833, inf
        %v930 = vsel %vm929, %v833, %v928
        %vm931 = vcmp.eq.f32.partialorder %v833, 0.0
        %v932 = vand.u32 %v833, 2147483648
        %v933 = vsel %vm931, %v932, %v930
        %v934 = vrsqrt.pop %v836
        %v935 = vmul.f32 %v836, %v934
        %vm936 = vcmp.eq.f32.partialorder %v836, inf
        %v937 = vsel %vm936, %v836, %v935
        %vm938 = vcmp.eq.f32.partialorder %v836, 0.0
        %v939 = vand.u32 %v836, 2147483648
        %v940 = vsel %vm938, %v939, %v937
        %v941 = vrsqrt.pop %v839
        %v942 = vmul.f32 %v839, %v941
        %vm943 = vcmp.eq.f32.partialorder %v839, inf
        %v944 = vsel %vm943, %v839, %v942
        %vm945 = vcmp.eq.f32.partialorder %v839, 0.0
        %v946 = vand.u32 %v839, 2147483648
        %v947 = vsel %vm945, %v946, %v944
        %v948 = vrsqrt.pop %v842
        %v949 = vmul.f32 %v842, %v948
        %vm950 = vcmp.eq.f32.partialorder %v842, inf
        %v951 = vsel %vm950, %v842, %v949
        %vm952 = vcmp.eq.f32.partialorder %v842, 0.0
        %v953 = vand.u32 %v842, 2147483648
        %v954 = vsel %vm952, %v953, %v951
        %v971 = vlaneseq
        %v972 = vand.u32 %v971, 127
        %v973 = vlaneseq
        %v974 = vshrl.u32 %v973, 7
        %v975 = vsub.s32 %v972, %v974
        %v976 = vrot.slane %v849, %v975
        %v977 = vadd.s32 %v972, 4294967288
        %v978 = vlaneseq
        %v979 = vshrl.u32 %v978, 7
        %v980 = vsub.s32 %v977, %v979
        %v981 = vrot.slane %v856, %v980
        %vm982 = vcmask 130112
        %v983 = vsel %vm982, %v981, %v976
        %v984 = vadd.s32 %v972, 4294967280
        %v985 = vlaneseq
        %v986 = vshrl.u32 %v985, 7
        %v987 = vsub.s32 %v984, %v986
        %v988 = vrot.slane %v863, %v987
        %vm989 = vcmask 195712
        %v990 = vsel %vm989, %v988, %v983
        %v991 = vadd.s32 %v972, 4294967272
        %v992 = vlaneseq
        %v993 = vshrl.u32 %v992, 7
        %v994 = vsub.s32 %v991, %v993
        %v995 = vrot.slane %v870, %v994
        %vm996 = vcmask 261312
        %v997 = vsel %vm996, %v995, %v990
        %v998 = vadd.s32 %v972, 4294967264
        %v999 = vlaneseq
        %v1000 = vshrl.u32 %v999, 7
        %v1001 = vsub.s32 %v998, %v1000
        %v1002 = vrot.slane %v877, %v1001
        %vm1003 = vcmask 326912
        %v1004 = vsel %vm1003, %v1002, %v997
        %v1005 = vadd.s32 %v972, 4294967256
        %v1006 = vlaneseq
        %v1007 = vshrl.u32 %v1006, 7
        %v1008 = vsub.s32 %v1005, %v1007
        %v1009 = vrot.slane %v884, %v1008
        %vm1010 = vcmask 392512
        %v1011 = vsel %vm1010, %v1009, %v1004
        %v1012 = vadd.s32 %v972, 4294967248
        %v1013 = vlaneseq
        %v1014 = vshrl.u32 %v1013, 7
        %v1015 = vsub.s32 %v1012, %v1014
        %v1016 = vrot.slane %v891, %v1015
        %vm1017 = vcmask 458112
        %v1018 = vsel %vm1017, %v1016, %v1011
        %v1019 = vadd.s32 %v972, 4294967240
        %v1020 = vlaneseq
        %v1021 = vshrl.u32 %v1020, 7
        %v1022 = vsub.s32 %v1019, %v1021
        %v1023 = vrot.slane %v898, %v1022
        %vm1024 = vcmask 523712
        %v1025 = vsel %vm1024, %v1023, %v1018
        %v1026 = vadd.s32 %v972, 4294967232
        %v1027 = vlaneseq
        %v1028 = vshrl.u32 %v1027, 7
        %v1029 = vsub.s32 %v1026, %v1028
        %v1030 = vrot.slane %v905, %v1029
        %vm1031 = vcmask 589312
        %v1032 = vsel %vm1031, %v1030, %v1025
        %v1033 = vadd.s32 %v972, 4294967224
        %v1034 = vlaneseq
        %v1035 = vshrl.u32 %v1034, 7
        %v1036 = vsub.s32 %v1033, %v1035
        %v1037 = vrot.slane %v912, %v1036
        %vm1038 = vcmask 654912
        %v1039 = vsel %vm1038, %v1037, %v1032
        %v1040 = vadd.s32 %v972, 4294967216
        %v1041 = vlaneseq
        %v1042 = vshrl.u32 %v1041, 7
        %v1043 = vsub.s32 %v1040, %v1042
        %v1044 = vrot.slane %v919, %v1043
        %vm1045 = vcmask 720512
        %v1046 = vsel %vm1045, %v1044, %v1039
        %v1047 = vadd.s32 %v972, 4294967208
        %v1048 = vlaneseq
        %v1049 = vshrl.u32 %v1048, 7
        %v1050 = vsub.s32 %v1047, %v1049
        %v1051 = vrot.slane %v926, %v1050
        %vm1052 = vcmask 786112
        %v1053 = vsel %vm1052, %v1051, %v1046
        %v1054 = vadd.s32 %v972, 4294967200
        %v1055 = vlaneseq
        %v1056 = vshrl.u32 %v1055, 7
        %v1057 = vsub.s32 %v1054, %v1056
        %v1058 = vrot.slane %v933, %v1057
        %vm1059 = vcmask 851712
        %v1060 = vsel %vm1059, %v1058, %v1053
        %v1061 = vadd.s32 %v972, 4294967192
        %v1062 = vlaneseq
        %v1063 = vshrl.u32 %v1062, 7
        %v1064 = vsub.s32 %v1061, %v1063
        %v1065 = vrot.slane %v940, %v1064
        %vm1066 = vcmask 917312
        %v1067 = vsel %vm1066, %v1065, %v1060
        %v1068 = vadd.s32 %v972, 4294967184
        %v1069 = vlaneseq
        %v1070 = vshrl.u32 %v1069, 7
        %v1071 = vsub.s32 %v1068, %v1070
        %v1072 = vrot.slane %v947, %v1071
        %vm1073 = vcmask 982912
        %v1074 = vsel %vm1073, %v1072, %v1067
        %v1075 = vadd.s32 %v972, 4294967176
        %v1076 = vlaneseq
        %v1077 = vshrl.u32 %v1076, 7
        %v1078 = vsub.s32 %v1075, %v1077
        %v1079 = vrot.slane %v954, %v1078
        %vm1080 = vcmask 1048512
        %v1081 = vsel %vm1080, %v1079, %v1074
        %1083 = vst [vmem:[%s239] sm:$0x1] %v1081
        %s1084 = sand.u32 %s142, 1
        %s1085 = scalar_lea.sflag [#allocation9], %s1084
        %s1086 = sand.u32 %s142, 1
        %s1087 = scalar_lea.vmem [#allocation8], %s1086
        // Predicated region
        $region44: #{tpu_custom_call.1} parent=35 // pred_check
          %p1088 = pneg %p152
        $region45: #{tpu_custom_call.1} parent=35 // pred_check_branch
          %1090 = sbr.rel (%p1088) target = $region47
        $region46: #{tpu_custom_call.1} parent=35 // pred_region
          %s1092 = ssub.s32 16, 16
          %1093 = vsyncadd %s1085, %s1092
          %s1094 = smul.addr %s35, 16
          %s1095 = scalar_lea.hbm %s7, %s1094
          %s1097 = sshll.u32 %s1087, 4
          %s1098 = int_to_ptr.vmem [resolvable:$true] %s1097
          %1100 = dma.vmem_to_hbm [thread:$0]  %s1098, 16, %s1095, %s1085
        $region47: #{tpu_custom_call.1} parent=35 // pred_fallthru
          _
      $region36: #{tpu_custom_call.1} parent=5 // pred_fallthru
        _
      %p1101 = scmp.le.s32.totalorder 2, %s30
      // Predicated region
      $region48: #{tpu_custom_call.1} parent=5 // pred_check
        %p1102 = pneg %p1101
      $region49: #{tpu_custom_call.1} parent=5 // pred_check_branch
        %1104 = sbr.rel (%p1102) target = $region51
      $region50: #{tpu_custom_call.1} parent=5 // pred_region
        %s1105 = ssub.s32 %s30, 2
        // Predicated region
        $region52: #{tpu_custom_call.1} parent=50 // pred_check
          %p1106 = pneg %p158
        $region53: #{tpu_custom_call.1} parent=50 // pred_check_branch
          %1108 = sbr.rel (%p1106) target = $region55
        $region54: #{tpu_custom_call.1} parent=50 // pred_region
          %s1109 = sand.u32 %s143, 1
          %s1110 = scalar_lea.sflag [#allocation9], %s1109
          %s1111 = sand.u32 %s143, 1
          %s1112 = scalar_lea.vmem [#allocation8], %s1111
          %1113 = dma.done %s1110, 16
        $region55: #{tpu_custom_call.1} parent=50 // pred_fallthru
          _
      $region51: #{tpu_custom_call.1} parent=5 // pred_fallthru
        _
    $region6: #{tpu_custom_call.1} parent=1 // loop_footer
      %s34 = sadd.s32 1, %s30
    $region7: #{tpu_custom_call.1} parent=1 // loop_footer_branch
      %29 = sbr.rel target = $region3
    $region8: #{tpu_custom_call.1} parent=1 // loop_exit
      _
    %1114 = vsyncpa [#allocation9], 1
    %s1115 = scalar_lea.sflag [#allocation9], 1
    %1116 = vsyncpa %s1115, 1

</llo_original>
